<compile_context>
chip_gen: v5e
topology: v5e:2x2
jax: 0.10.0
libtpu: 0.0.40
codegen_flags: <defaults>
</compile_context>

<pallas_src>
import jax
import jax.numpy as jnp
from jax.experimental import pallas as pl
from jax.experimental.pallas import tpu as pltpu

_LANES = 128  # lane width of a vreg


def _sublane_multiple(dtype) -> int:
    # Minimum second-minor tile multiple for this dtype on TPU.
    itemsize = jnp.dtype(dtype).itemsize
    return {4: 8, 2: 16, 1: 32}.get(itemsize, 8)


def _round_up(x: int, m: int) -> int:
    return ((x + m - 1) // m) * m


def linear1x1_kernel(w_ref, b_ref, x_ref, o_ref):
    # w_ref, b_ref: (1,) f32 scalars in SMEM.
    # x_ref, o_ref: (br, 128) lane-dense tiles in VMEM.
    w = w_ref[0]
    b = b_ref[0]
    x = x_ref[...].astype(jnp.float32)
    o_ref[...] = (x * w + b).astype(o_ref.dtype)


def dummy_model_forward(x, weight, bias, *, block_rows=4096, force_pallas=False):
    """Pallas equivalent of DummyModel.forward (nn.Linear(1, 1)).

    x: (batch, 1), weight: (1, 1) (PyTorch (out, in) layout), bias: (1,).
    Returns (batch, 1).
    """
    batch, in_features = x.shape
    out_features, w_in = weight.shape
    assert in_features == 1 and out_features == 1 and w_in == 1, (
        "DummyModel uses nn.Linear(1, 1)")

    dtype = x.dtype
    w_scalar = weight.reshape(-1).astype(jnp.float32)
    b_scalar = bias.reshape(-1).astype(jnp.float32)

    n = batch  # total elements (in_features == 1)

    # Tiny-batch fast path: a single fused XLA elementwise op beats any
    # pallas_call launch + layout plumbing at these sizes.
    if not force_pallas and n <= (1 << 14):
        return (x.astype(jnp.float32) * w_scalar[0] + b_scalar[0]).astype(dtype)

    sub = _sublane_multiple(dtype)

    # Lane-dense view: batch on the lane axis -> (rows, 128).
    # Pad only to the next multiple of 128 (<= 127 extra elements); the pad /
    # reshape is allowed to fuse into the pallas_call input.
    rows = pl.cdiv(n, _LANES)
    n_pad = rows * _LANES
    x_flat = x.reshape(-1)
    if n_pad != n:
        x_flat = jnp.pad(x_flat, (0, n_pad - n))
    x2d = x_flat.reshape(rows, _LANES)

    # Block rows: as large as allowed (amortize per-step overhead), but keep
    # >= 4 grid steps for large inputs so v7x's 2 TensorCores both get work.
    br = min(block_rows, _round_up(rows, sub))
    itemsize = jnp.dtype(dtype).itemsize
    if rows >= 4 * sub and rows * _LANES * itemsize >= (2 << 20):
        br = min(br, _round_up(pl.cdiv(rows, 4), sub))
    br = max(sub, (br // sub) * sub)
    if br >= rows:
        br = rows  # single block; block dim == array dim is always legal.

    grid = (pl.cdiv(rows, br),)  # last block may be partial (masked by Pallas)

    out2d = pl.pallas_call(
        linear1x1_kernel,
        out_shape=jax.ShapeDtypeStruct((rows, _LANES), dtype),
        grid=grid,
        in_specs=[
            pl.BlockSpec(memory_space=pltpu.MemorySpace.SMEM),  # weight (1,) f32
            pl.BlockSpec(memory_space=pltpu.MemorySpace.SMEM),  # bias   (1,) f32
            pl.BlockSpec((br, _LANES), lambda i: (i, 0)),       # x tiles
        ],
        out_specs=pl.BlockSpec((br, _LANES), lambda i: (i, 0)),
        compiler_params=pltpu.CompilerParams(
            dimension_semantics=("parallel",),
            allow_input_fusion=[False, False, True],  # fuse the pad/reshape in
        ),
    )(w_scalar, b_scalar, x2d)

    out_flat = out2d.reshape(-1)
    if n_pad != n:
        # NOTE: padded tail lanes hold `b`, not 0 -> slice them off.
        out_flat = out_flat[:n]
    return out_flat.reshape(batch, out_features)


if __name__ == "__main__":
    key = jax.random.PRNGKey(0)
    kx, kw, kb = jax.random.split(key, 3)

    # Deterministic parameters, same shapes as nn.Linear(1, 1).
    weight = jax.random.normal(kw, (1, 1), dtype=jnp.float32)  # (out, in)
    bias = jax.random.normal(kb, (1,), dtype=jnp.float32)      # (out,)

    # (batch, force_pallas): small fast-path demo, small forced-Pallas demo,
    # and a modest non-multiple-of-128 batch that exercises the partial last
    # block + multi-step parallel grid.
    cases = [(8, False), (8, True), (300, True), (8997, True)]
    for batch, force in cases:
        x = jax.random.normal(kx, (batch, 1), dtype=jnp.float32)
        y = dummy_model_forward(x, weight, bias, force_pallas=force)
        y = jax.block_until_ready(y)

        y_ref = x @ weight.T + bias
        assert y.shape == (batch, 1), (y.shape, batch)
        assert jnp.allclose(y, y_ref, atol=1e-5, rtol=1e-5), (
            f"mismatch vs reference at batch={batch}, force_pallas={force}")

    print("KERNEL_OK")
</pallas_src>

<mosaic_0001>
module attributes {stable_mosaic.version = 11 : i64} {
  func.func @linear1x1_kernel(%arg0: i32, %arg1: memref<1xf32, #tpu.memory_space<smem>>, %arg2: memref<1xf32, #tpu.memory_space<smem>>, %arg3: memref<1x128xf32, #tpu.memory_space<vmem>>, %arg4: memref<1x128xf32, #tpu.memory_space<vmem>>) attributes {dimension_semantics = [#tpu.dimension_semantics<parallel>], iteration_bounds = array<i64: 1>, scalar_prefetch = 0 : i64, scratch_operands = 0 : i64, tpu.core_type = #tpu.core_type<tc>, window_params = [{transform_indices = @transform_0, window_bounds = array<i64: 1>}, {transform_indices = @transform_1, window_bounds = array<i64: 1>}, {transform_indices = @transform_2, window_bounds = array<i64: 1, 128>}, {transform_indices = @transform_3, window_bounds = array<i64: 1, 128>}]} {
    %c0 = arith.constant 0 : index
    %0 = memref.load %arg1[%c0] : memref<1xf32, #tpu.memory_space<smem>>
    %c0_0 = arith.constant 0 : index
    %1 = memref.load %arg2[%c0_0] : memref<1xf32, #tpu.memory_space<smem>>
    %c0_1 = arith.constant 0 : index
    %c0_2 = arith.constant 0 : index
    %2 = vector.load %arg3[%c0_1, %c0_2] : memref<1x128xf32, #tpu.memory_space<vmem>>, vector<1x128xf32>
    %3 = vector.broadcast %0 : f32 to vector<1x128xf32>
    %4 = arith.mulf %2, %3 : vector<1x128xf32>
    %5 = vector.broadcast %1 : f32 to vector<1x128xf32>
    %6 = arith.addf %4, %5 : vector<1x128xf32>
    %c0_3 = arith.constant 0 : index
    %c0_4 = arith.constant 0 : index
    %7 = vector.load %arg4[%c0_3, %c0_4] : memref<1x128xf32, #tpu.memory_space<vmem>>, vector<1x128xf32>
    tpu.vector_store %arg4[%c0_3, %c0_4], %6 {strides = array<i32>} : memref<1x128xf32, #tpu.memory_space<vmem>>, vector<1x128xf32>,
    return
  }
  func.func @transform_0(%arg0: i32) -> i32 {
    %c0_i32 = arith.constant 0 : i32
    %c0_i32_0 = arith.constant 0 : i32
    return %c0_i32 : i32
  }
  func.func @transform_1(%arg0: i32) -> i32 {
    %c0_i32 = arith.constant 0 : i32
    %c0_i32_0 = arith.constant 0 : i32
    return %c0_i32 : i32
  }
  func.func @transform_2(%arg0: i32) -> (i32, i32) {
    %c0_i32 = arith.constant 0 : i32
    %c0_i32_0 = arith.constant 0 : i32
    return %arg0, %c0_i32 : i32, i32
  }
  func.func @transform_3(%arg0: i32) -> (i32, i32) {
    %c0_i32 = arith.constant 0 : i32
    %c0_i32_0 = arith.constant 0 : i32
    return %arg0, %c0_i32 : i32, i32
  }
}

</mosaic_0001>

<llo_original>
// kernel: tpu_custom_call.1
$region0: #{tpu_custom_call.1}
  #allocation0 [shape = 'u32[]', space=smem, size = 0x4, offset = 0x4, fixed_abs, tag = 'smem constant byte address 0x4 - core index']
  #allocation1 [shape = 'u32[72,128]{1,0:T(1,128)}', space=vmem, size = 0x9000, scoped, tag = 'internal scratch']
  #allocation2 [shape = 'f32[1]{0:T(128)S(6)}', space=smem, size = 0x200, scoped, tag = 'scoped memory for tpu_custom_call.1']
  #allocation3 [shape = 'f32[1]{0:T(128)S(6)}', space=smem, size = 0x200, scoped, tag = 'scoped memory for tpu_custom_call.1']
  %s0 = inlined_call_operand.<no memory space> [shape: f32[1], index: 0, kind: input, shape index: {}]
  %s1 = inlined_call_operand.<no memory space> [shape: f32[1], index: 1, kind: input, shape index: {}]
  %s2 = inlined_call_operand.vmem [shape: f32[1,128], index: 2, kind: input, shape index: {}]
  %s3 = inlined_call_operand.hbm [shape: f32[1,128], index: 3, kind: output, shape index: {}]
  %s4 = sld [smem:[#allocation0]]
  $region22: #{tpu_custom_call.1} parent=0
    _
  %s6 = ssub.s32 1, %s4
  %s7 = scalar_select 0, %s6, %s4
  %8 = sst [smem:[#allocation2]] %s0
  %9 = sst [smem:[#allocation3]] %s1
  $region1: #{tpu_custom_call.1} parent=0
    #allocation4 [shape = 'u8[512]{0}', space=vmem, size = 0x400, scoped, tag = 'output window, operand 0, single buffered']
    #allocation5 [shape = 's32[1]{0}', space=sflag, size = 0x4, scoped, tag = 'scoped memory for tpu_custom_call.1']
    %10 = vsyncpa [#allocation5], 0
    // Predicated region
    $region2: #{tpu_custom_call.1} parent=1 // pred_check
      _
    $region3: #{tpu_custom_call.1} parent=1 // pred_check_branch
      %12 = sbr.rel (0) target = $region5
    $region4: #{tpu_custom_call.1} parent=1 // pred_region
      _
    $region5: #{tpu_custom_call.1} parent=1 // pred_fallthru
      _
    // Predicated region
    $region6: #{tpu_custom_call.1} parent=1 // pred_check
      _
    $region7: #{tpu_custom_call.1} parent=1 // pred_check_branch
      %14 = sbr.rel (0) target = $region9
    $region8: #{tpu_custom_call.1} parent=1 // pred_region
      _
    $region9: #{tpu_custom_call.1} parent=1 // pred_fallthru
      _
    // Predicated region
    $region10: #{tpu_custom_call.1} parent=1 // pred_check
      _
    $region11: #{tpu_custom_call.1} parent=1 // pred_check_branch
      %16 = sbr.rel (0) target = $region13
    $region12: #{tpu_custom_call.1} parent=1 // pred_region
      _
    $region13: #{tpu_custom_call.1} parent=1 // pred_fallthru
      _
    %s17 = sld [smem:[#allocation2]]
    %s18 = sld [smem:[#allocation3]]
    %v19 = vld [vmem:[%s2] sm:$0x1]
    %v20 = vstv %s17
    %v21 = vmul.f32 %v19, %v20
    %v22 = vstv %s18
    %v23 = vadd.f32 %v21, %v22
    %24 = vst [vmem:[#allocation4] sm:$0x1] %v23
    // Predicated region
    $region14: #{tpu_custom_call.1} parent=1 // pred_check
      _
    $region15: #{tpu_custom_call.1} parent=1 // pred_check_branch
      %26 = sbr.rel (0) target = $region17
    $region16: #{tpu_custom_call.1} parent=1 // pred_region
      %28 = vsyncadd [#allocation5], 0
      %s30 = sshll.u32 [#allocation4], 4
      %s31 = int_to_ptr.vmem [resolvable:$true] %s30
      %s32 = sshll.u32 %s3, 4
      %s33 = int_to_ptr.hbm [resolvable:$true] %s32
      %35 = dma.vmem_to_hbm [thread:$0]  %s31, 16, %s33, [#allocation5]
    $region17: #{tpu_custom_call.1} parent=1 // pred_fallthru
      _
    // Predicated region
    $region18: #{tpu_custom_call.1} parent=1 // pred_check
      _
    $region19: #{tpu_custom_call.1} parent=1 // pred_check_branch
      %37 = sbr.rel (0) target = $region21
    $region20: #{tpu_custom_call.1} parent=1 // pred_region
      %39 = dma.done [#allocation5], 16
    $region21: #{tpu_custom_call.1} parent=1 // pred_fallthru
      _
    %40 = vsyncpa [#allocation5], 1

</llo_original>
